<compile_context>
chip_gen: v7x
topology: tpu7x:2x2x1
jax: 0.10.0
libtpu: 0.0.40
codegen_flags: <defaults>
</compile_context>

<pallas_src>
import functools

import jax
import jax.numpy as jnp
from jax.experimental import pallas as pl
from jax.experimental.pallas import tpu as pltpu


def layernorm_kernel(x_ref, gamma_ref, beta_ref, o_ref, *, eps, hidden):
    # Upcast once; `x` is the only full-tile f32 temporary kept live.
    x = x_ref[...].astype(jnp.float32)                      # (row_tile, hidden)
    row_sum = jnp.sum(x, axis=-1, keepdims=True)            # (row_tile, 1)
    row_sumsq = jnp.sum(x * x, axis=-1, keepdims=True)      # (row_tile, 1)
    mean = row_sum * (1.0 / hidden)
    # Unbiased variance (ddof=1), matching torch.Tensor.std() default:
    #   var = (sum(x^2) - n * mean^2) / (n - 1)
    var = (row_sumsq - hidden * mean * mean) * (1.0 / (hidden - 1))
    var = jnp.maximum(var, 0.0)                              # guard fp cancellation
    std = jnp.sqrt(var)
    # eps is added to std (NOT to var), matching the reference module. Exact
    # divide on a (row_tile, 1) column is negligible work and avoids the
    # approximate-reciprocal error that broke the reference check.
    inv = 1.0 / (std + eps)
    gamma = gamma_ref[...].astype(jnp.float32)               # (1, hidden)
    beta = beta_ref[...].astype(jnp.float32)                 # (1, hidden)
    o_ref[...] = (gamma * ((x - mean) * inv) + beta).astype(o_ref.dtype)


def _vmem_capacity_bytes():
    # Generation-aware: 128 MiB on v5e/v6e, 64 MiB per TensorCore on v7x.
    try:
        return int(pltpu.get_tpu_info().vmem_capacity_bytes)
    except Exception:
        return 64 * 1024 * 1024       # conservative (v7x-sized) fallback


def _choose_tiling(n_rows, hidden, itemsize):
    # Sublane-packing granularity: 8 rows for 4B dtypes, 16 for bf16, 32 for 1B.
    sub = max(8, 32 // max(1, itemsize))

    vmem_cap = _vmem_capacity_bytes()
    # Never hand Mosaic the entire physical VMEM: leave headroom for internal
    # scratch and the f32 temporaries (~48 MiB on v7x, ~96 MiB on v5e/v6e).
    vmem_limit = min(int(vmem_cap * 0.75), 100 * 1024 * 1024)

    # Per-row VMEM cost of one grid step:
    #   pipelined I/O: (input + output) x double-buffer = 4 copies @ input dtype
    #   in-kernel f32 temporaries (upcast tile + transient output expr) ~ 12 B/elem
    per_row_bytes = (4 * itemsize + 12) * hidden
    budget = max(per_row_bytes, vmem_limit - 4 * 1024 * 1024)
    rt = budget // per_row_bytes
    rt = max(sub, min(4096, (rt // sub) * sub))
    rows_rounded = ((n_rows + sub - 1) // sub) * sub
    return min(rt, rows_rounded), vmem_limit


def layer_norm(x, gamma, beta, eps=1e-6, row_tile=None, core_parallel=False):
    """x: (..., hidden). Normalizes over the last axis (BERT-style LayerNorm)."""
    orig_shape = x.shape
    hidden = orig_shape[-1]
    if hidden < 2:
        raise ValueError("Unbiased std needs hidden >= 2 (hidden == 1 is a "
                         "divide-by-zero, same as torch).")
    x2d = x.reshape(-1, hidden)
    n_rows = x2d.shape[0]
    itemsize = jnp.dtype(x2d.dtype).itemsize

    auto_tile, vmem_limit = _choose_tiling(n_rows, hidden, itemsize)
    if row_tile is None:
        row_tile = auto_tile

    gamma2d = gamma.reshape(1, hidden)
    beta2d = beta.reshape(1, hidden)

    kernel = functools.partial(layernorm_kernel, eps=eps, hidden=hidden)

    # Rows are independent: the masked partial last block (when row_tile does
    # not divide n_rows) is safe, so no padding / extra HBM passes.
    grid = (pl.cdiv(n_rows, row_tile),)

    # TODO(synk): on v7x, flip core_parallel=True (pltpu.CORE_PARALLEL) so the
    # HBM-bound row sweep is actually split across both TensorCores.
    semantics = (pltpu.CORE_PARALLEL,) if core_parallel else ("parallel",)

    # TODO(synk): if hidden is ever not a multiple of 128 at production sizes,
    # pad the last dim in the wrapper and mask the pad inside the reductions
    # rather than relying on masked vst.msk stores.
    cost = pl.CostEstimate(
        flops=8 * n_rows * hidden,
        transcendentals=2 * n_rows,
        bytes_accessed=2 * n_rows * hidden * itemsize + 2 * hidden * itemsize,
    )

    out = pl.pallas_call(
        kernel,
        out_shape=jax.ShapeDtypeStruct((n_rows, hidden), x.dtype),
        grid_spec=pltpu.PrefetchScalarGridSpec(
            num_scalar_prefetch=0,
            grid=grid,
            in_specs=[
                pl.BlockSpec((row_tile, hidden), lambda i: (i, 0)),
                pl.BlockSpec((1, hidden), lambda i: (0, 0)),
                pl.BlockSpec((1, hidden), lambda i: (0, 0)),
            ],
            out_specs=pl.BlockSpec((row_tile, hidden), lambda i: (i, 0)),
        ),
        compiler_params=pltpu.CompilerParams(
            dimension_semantics=semantics,
            vmem_limit_bytes=vmem_limit,
        ),
        cost_estimate=cost,
    )(x2d, gamma2d, beta2d)

    return out.reshape(orig_shape)


if __name__ == "__main__":
    key = jax.random.PRNGKey(0)
    batch, seq, hidden = 2, 8, 32
    x = jax.random.normal(key, (batch, seq, hidden), dtype=jnp.float32)

    # Parameter init matching nn.Parameter(torch.ones/zeros(features)).
    gamma = jnp.ones((hidden,), dtype=jnp.float32)   # a_2
    beta = jnp.zeros((hidden,), dtype=jnp.float32)   # b_2
    eps = 1e-6

    out = layer_norm(x, gamma, beta, eps=eps)
    out = jax.block_until_ready(out)

    # Reference in plain JAX (unbiased std, eps added to std).
    mean = jnp.mean(x, axis=-1, keepdims=True)
    std = jnp.sqrt(jnp.sum((x - mean) ** 2, axis=-1, keepdims=True) / (hidden - 1))
    ref = gamma * (x - mean) / (std + eps) + beta
    assert jnp.allclose(out, ref, atol=1e-3, rtol=1e-3), "mismatch vs reference"

    print("KERNEL_OK")
</pallas_src>

<mosaic_0001>
module attributes {stable_mosaic.version = 11 : i64} {
  func.func @layernorm_kernel(%arg0: i32, %arg1: memref<16x32xf32, #tpu.memory_space<vmem>>, %arg2: memref<1x32xf32, #tpu.memory_space<vmem>>, %arg3: memref<1x32xf32, #tpu.memory_space<vmem>>, %arg4: memref<16x32xf32, #tpu.memory_space<vmem>>) attributes {dimension_semantics = [#tpu.dimension_semantics<parallel>], iteration_bounds = array<i64: 1>, scalar_prefetch = 0 : i64, scratch_operands = 0 : i64, tpu.core_type = #tpu.core_type<tc>, window_params = [{transform_indices = @transform_0, window_bounds = array<i64: 16, 32>}, {pipeline_mode = #tpu.pipeline_mode<synchronous>, transform_indices = @transform_1, window_bounds = array<i64: 1, 32>}, {pipeline_mode = #tpu.pipeline_mode<synchronous>, transform_indices = @transform_2, window_bounds = array<i64: 1, 32>}, {transform_indices = @transform_3, window_bounds = array<i64: 16, 32>}]} {
    %c0 = arith.constant 0 : index
    %c0_0 = arith.constant 0 : index
    %0 = vector.load %arg1[%c0, %c0_0] : memref<16x32xf32, #tpu.memory_space<vmem>>, vector<16x32xf32>
    %cst = arith.constant dense<0.000000e+00> : vector<16xf32>
    %1 = vector.multi_reduction <add>, %0, %cst [1] : vector<16x32xf32> to vector<16xf32>
    %2 = vector.shape_cast %1 : vector<16xf32> to vector<16x1xf32>
    %3 = arith.mulf %0, %0 : vector<16x32xf32>
    %cst_1 = arith.constant dense<0.000000e+00> : vector<16xf32>
    %4 = vector.multi_reduction <add>, %3, %cst_1 [1] : vector<16x32xf32> to vector<16xf32>
    %5 = vector.shape_cast %4 : vector<16xf32> to vector<16x1xf32>
    %cst_2 = arith.constant 3.125000e-02 : f32
    %6 = vector.broadcast %cst_2 : f32 to vector<16x1xf32>
    %7 = arith.mulf %2, %6 : vector<16x1xf32>
    %cst_3 = arith.constant 3.200000e+01 : f32
    %8 = vector.broadcast %cst_3 : f32 to vector<16x1xf32>
    %9 = arith.mulf %8, %7 : vector<16x1xf32>
    %10 = arith.mulf %9, %7 : vector<16x1xf32>
    %11 = arith.subf %5, %10 : vector<16x1xf32>
    %cst_4 = arith.constant 0.0322580636 : f32
    %12 = vector.broadcast %cst_4 : f32 to vector<16x1xf32>
    %13 = arith.mulf %11, %12 : vector<16x1xf32>
    %cst_5 = arith.constant 0.000000e+00 : f32
    %14 = vector.broadcast %cst_5 : f32 to vector<16x1xf32>
    %15 = arith.maximumf %13, %14 : vector<16x1xf32>
    %16 = math.sqrt %15 : vector<16x1xf32>
    %cst_6 = arith.constant 9.99999997E-7 : f32
    %17 = vector.broadcast %cst_6 : f32 to vector<16x1xf32>
    %18 = arith.addf %16, %17 : vector<16x1xf32>
    %cst_7 = arith.constant 1.000000e+00 : f32
    %19 = vector.broadcast %cst_7 : f32 to vector<16x1xf32>
    %20 = arith.divf %19, %18 : vector<16x1xf32>
    %c0_8 = arith.constant 0 : index
    %c0_9 = arith.constant 0 : index
    %21 = vector.load %arg2[%c0_8, %c0_9] : memref<1x32xf32, #tpu.memory_space<vmem>>, vector<1x32xf32>
    %c0_10 = arith.constant 0 : index
    %c0_11 = arith.constant 0 : index
    %22 = vector.load %arg3[%c0_10, %c0_11] : memref<1x32xf32, #tpu.memory_space<vmem>>, vector<1x32xf32>
    %23 = vector.broadcast %7 : vector<16x1xf32> to vector<16x32xf32>
    %24 = arith.subf %0, %23 : vector<16x32xf32>
    %25 = vector.broadcast %20 : vector<16x1xf32> to vector<16x32xf32>
    %26 = arith.mulf %24, %25 : vector<16x32xf32>
    %27 = vector.broadcast %21 : vector<1x32xf32> to vector<16x32xf32>
    %28 = arith.mulf %27, %26 : vector<16x32xf32>
    %29 = vector.broadcast %22 : vector<1x32xf32> to vector<16x32xf32>
    %30 = arith.addf %28, %29 : vector<16x32xf32>
    %c0_12 = arith.constant 0 : index
    %c0_13 = arith.constant 0 : index
    %31 = vector.load %arg4[%c0_12, %c0_13] : memref<16x32xf32, #tpu.memory_space<vmem>>, vector<16x32xf32>
    tpu.vector_store %arg4[%c0_12, %c0_13], %30 {strides = array<i32>} : memref<16x32xf32, #tpu.memory_space<vmem>>, vector<16x32xf32>,
    return
  }
  func.func @transform_0(%arg0: i32) -> (i32, i32) {
    %c0_i32 = arith.constant 0 : i32
    %c0_i32_0 = arith.constant 0 : i32
    return %arg0, %c0_i32 : i32, i32
  }
  func.func @transform_1(%arg0: i32) -> (i32, i32) {
    %c0_i32 = arith.constant 0 : i32
    %c0_i32_0 = arith.constant 0 : i32
    %c0_i32_1 = arith.constant 0 : i32
    return %c0_i32, %c0_i32_0 : i32, i32
  }
  func.func @transform_2(%arg0: i32) -> (i32, i32) {
    %c0_i32 = arith.constant 0 : i32
    %c0_i32_0 = arith.constant 0 : i32
    %c0_i32_1 = arith.constant 0 : i32
    return %c0_i32, %c0_i32_0 : i32, i32
  }
  func.func @transform_3(%arg0: i32) -> (i32, i32) {
    %c0_i32 = arith.constant 0 : i32
    %c0_i32_0 = arith.constant 0 : i32
    return %arg0, %c0_i32 : i32, i32
  }
}

</mosaic_0001>

<llo_original>
// kernel: tpu_custom_call.1
$region0: #{tpu_custom_call.1}
  #allocation0 [shape = 'u32[]', space=smem, size = 0x4, offset = 0x4, fixed_abs, tag = 'smem constant byte address 0x4 - core index']
  #allocation1 [shape = 'u32[144,128]{1,0:T(1,128)}', space=vmem, size = 0x12000, scoped, tag = 'internal scratch']
  %s0 = inlined_call_operand.hbm [shape: f32[16,32], index: 0, kind: input, shape index: {}]
  %s1 = inlined_call_operand.vmem [shape: f32[1,32], index: 1, kind: input, shape index: {}]
  %s2 = inlined_call_operand.vmem [shape: f32[1,32], index: 2, kind: input, shape index: {}]
  %s3 = inlined_call_operand.hbm [shape: f32[16,32], index: 3, kind: output, shape index: {}]
  %s4 = sld [smem:[#allocation0]]
  $region26: #{tpu_custom_call.1} parent=0
    _
  %s6 = ssub.s32 1, %s4
  %s7 = scalar_select 0, %s6, %s4
  $region1: #{tpu_custom_call.1} parent=0
    #allocation2 [shape = 'u8[8192]{0}', space=vmem, size = 0x2000, scoped, tag = 'input window, operand 0, single buffered']
    #allocation3 [shape = 's32[1]{0}', space=sflag, size = 0x4, scoped, tag = 'scoped memory for tpu_custom_call.1']
    #allocation4 [shape = 's32[1]{0}', space=sflag, size = 0x4, scoped, tag = 'scoped memory for tpu_custom_call.1']
    #allocation5 [shape = 'u8[8192]{0}', space=vmem, size = 0x2000, scoped, tag = 'output window, operand 0, single buffered']
    %8 = vsyncpa [#allocation3], 0
    %9 = vsyncpa [#allocation4], 0
    // Predicated region
    $region2: #{tpu_custom_call.1} parent=1 // pred_check
      _
    $region3: #{tpu_custom_call.1} parent=1 // pred_check_branch
      %11 = sbr.rel (0) target = $region5
    $region4: #{tpu_custom_call.1} parent=1 // pred_region
      %s13 = ssub.s32 256, 256
      %14 = vsyncadd [#allocation3], %s13
      %s15 = sshll.u32 [#allocation2], 4
      %s16 = int_to_ptr.vmem [resolvable:$true] %s15
      %21 = dma.hbm_to_vmem [thread:$0]  %s0, 256, %s16, [#allocation3], 128, 128, 8
    $region5: #{tpu_custom_call.1} parent=1 // pred_fallthru
      _
    // Predicated region
    $region6: #{tpu_custom_call.1} parent=1 // pred_check
      _
    $region7: #{tpu_custom_call.1} parent=1 // pred_check_branch
      %23 = sbr.rel (0) target = $region9
    $region8: #{tpu_custom_call.1} parent=1 // pred_region
      _
    $region9: #{tpu_custom_call.1} parent=1 // pred_fallthru
      _
    // Predicated region
    $region10: #{tpu_custom_call.1} parent=1 // pred_check
      _
    $region11: #{tpu_custom_call.1} parent=1 // pred_check_branch
      %25 = sbr.rel (0) target = $region13
    $region12: #{tpu_custom_call.1} parent=1 // pred_region
      _
    $region13: #{tpu_custom_call.1} parent=1 // pred_fallthru
      _
    // Predicated region
    $region14: #{tpu_custom_call.1} parent=1 // pred_check
      _
    $region15: #{tpu_custom_call.1} parent=1 // pred_check_branch
      %27 = sbr.rel (0) target = $region17
    $region16: #{tpu_custom_call.1} parent=1 // pred_region
      %28 = dma.done [#allocation3], 256
    $region17: #{tpu_custom_call.1} parent=1 // pred_fallthru
      _
    %v29 = vld [vmem:[#allocation2] sm:$0xff]
    %v30 = vld [vmem:[#allocation2 + $0x8] sm:$0xff]
    %vm31 = vcmask 261120
    %v32 = vsel %vm31, %v29, 0.0
    %33 = vadd.xlane.f32.xlu0 %v32
    %v34 = vpop.xlane.xlu0 %33
    %v35 = vsel %vm31, %v30, 0.0
    %36 = vadd.xlane.f32.xlu0 %v35
    %v37 = vpop.xlane.xlu0 %36
    %v38 = vmul.f32 %v29, %v29
    %v39 = vmul.f32 %v30, %v30
    %v40 = vsel %vm31, %v38, 0.0
    %41 = vadd.xlane.f32.xlu0 %v40
    %v42 = vpop.xlane.xlu0 %41
    %v43 = vsel %vm31, %v39, 0.0
    %44 = vadd.xlane.f32.xlu0 %v43
    %v45 = vpop.xlane.xlu0 %44
    %v46 = vmul.f32 %v34, 0.03125
    %v47 = vmul.f32 %v37, 0.03125
    %v48 = vmul.f32 %v46, 32.0
    %v49 = vmul.f32 %v47, 32.0
    %v50 = vmul.f32 %v48, %v46
    %v51 = vmul.f32 %v49, %v47
    %v52 = vsub.f32 %v42, %v50
    %v53 = vsub.f32 %v45, %v51
    %v54 = vmul.f32 %v52, 0.032258064
    %v55 = vmul.f32 %v53, 0.032258064
    %v56 = vmax.f32 %v54, 0.0
    %v57 = vmax.f32 %v55, 0.0
    %v58 = vrsqrt.pop %v56
    %v59 = vmul.f32 %v56, %v58
    %vm60 = vcmp.eq.f32.partialorder %v56, inf
    %v61 = vsel %vm60, %v56, %v59
    %vm62 = vcmp.eq.f32.partialorder %v56, 0.0
    %v63 = vand.u32 %v56, 2147483648
    %v64 = vsel %vm62, %v63, %v61
    %v65 = vrsqrt.pop %v57
    %v66 = vmul.f32 %v57, %v65
    %vm67 = vcmp.eq.f32.partialorder %v57, inf
    %v68 = vsel %vm67, %v57, %v66
    %vm69 = vcmp.eq.f32.partialorder %v57, 0.0
    %v70 = vand.u32 %v57, 2147483648
    %v71 = vsel %vm69, %v70, %v68
    %v72 = vadd.f32 %v64, 1e-06
    %v73 = vadd.f32 %v71, 1e-06
    %v74 = vrcp.pop %v72
    %v75 = vmul.f32 1.0, %v74
    %v76 = vrcp.pop %v73
    %v77 = vmul.f32 1.0, %v76
    %v78 = vld [vmem:[%s1] sm:$0x1]
    %v79 = vld [vmem:[%s2] sm:$0x1]
    %v80 = vsub.f32 %v29, %v46
    %v81 = vsub.f32 %v30, %v47
    %v82 = vmul.f32 %v80, %v75
    %v83 = vmul.f32 %v81, %v77
    %v85 = vlaneseq
    %v86 = vshrl.u32 %v85, 7
    %v87 = vsub.s32 0, %v86
    %v88 = vrot.slane %v78, %v87
    %v90 = vmul.f32 %v88, %v82
    %v91 = vmul.f32 %v88, %v83
    %v93 = vlaneseq
    %v94 = vshrl.u32 %v93, 7
    %v95 = vsub.s32 0, %v94
    %v96 = vrot.slane %v79, %v95
    %v98 = vadd.f32 %v90, %v96
    %v99 = vadd.f32 %v91, %v96
    %100 = vst.msk [vmem:[#allocation5] sm:$0xff] %vm31, %v98
    %101 = vst.msk [vmem:[#allocation5 + $0x8] sm:$0xff] %vm31, %v99
    // Predicated region
    $region18: #{tpu_custom_call.1} parent=1 // pred_check
      _
    $region19: #{tpu_custom_call.1} parent=1 // pred_check_branch
      %103 = sbr.rel (0) target = $region21
    $region20: #{tpu_custom_call.1} parent=1 // pred_region
      %s105 = ssub.s32 256, 256
      %106 = vsyncadd [#allocation4], %s105
      %s107 = sshll.u32 [#allocation5], 4
      %s108 = int_to_ptr.vmem [resolvable:$true] %s107
      %113 = dma.vmem_to_hbm [thread:$0]  %s108, 256, %s3, [#allocation4], 128, 128, 8
    $region21: #{tpu_custom_call.1} parent=1 // pred_fallthru
      _
    // Predicated region
    $region22: #{tpu_custom_call.1} parent=1 // pred_check
      _
    $region23: #{tpu_custom_call.1} parent=1 // pred_check_branch
      %115 = sbr.rel (0) target = $region25
    $region24: #{tpu_custom_call.1} parent=1 // pred_region
      %116 = dma.done [#allocation4], 256
    $region25: #{tpu_custom_call.1} parent=1 // pred_fallthru
      _
    %117 = vsyncpa [#allocation3], 1
    %118 = vsyncpa [#allocation4], 1

</llo_original>
